<compile_context>
chip_gen: v7x
topology: tpu7x:2x2x1
jax: 0.10.0
libtpu: 0.0.40
codegen_flags: <defaults>
</compile_context>

<pallas_src>
import jax
import jax.numpy as jnp
from jax.experimental import pallas as pl
from jax.experimental.pallas import tpu as pltpu


def gnn_q_kernel(a_hat_t_ref, x_t_ref, s_cat_t_ref,
                 w1_t_ref, b1_ref, w2_t_ref, b2_ref,
                 wq_cat_t_ref, bq_ref, q_ref):
    f32 = jnp.float32
    a_hat_t = a_hat_t_ref[...]                                    # [N, N]

    # GCN layer 1 (transposed): H1^T = relu(W1^T @ X^T @ A_hat^T + b1)
    xw = jnp.dot(w1_t_ref[...], x_t_ref[...],
                 preferred_element_type=f32)                      # [H, N]
    h1_t = jnp.maximum(
        jnp.dot(xw, a_hat_t, preferred_element_type=f32) + b1_ref[...], 0.0)

    # GCN layer 2 (transposed): H2^T = relu(W2^T @ H1^T @ A_hat^T + b2)
    hw = jnp.dot(w2_t_ref[...], h1_t, preferred_element_type=f32)  # [H, N]
    h2_t = jnp.maximum(
        jnp.dot(hw, a_hat_t, preferred_element_type=f32) + b2_ref[...], 0.0)

    # Fused gather of u/v embeddings: one matmul -> [H, 2*A_pad]
    sel_t = jnp.dot(h2_t, s_cat_t_ref[...], preferred_element_type=f32)

    # Q decoder on VPU + sublane reduction (no width-1 MXU matmul):
    # q[a] = sum_h H2[u_a,h]*Wq_u[h] + sum_h H2[v_a,h]*Wq_v[h] + bq
    red = jnp.sum(sel_t * wq_cat_t_ref[...], axis=0, keepdims=True)  # [1, 2*A_pad]
    a_pad = q_ref.shape[-1]
    q_ref[...] = red[:, :a_pad] + red[:, a_pad:] + bq_ref[...]       # [1, A_pad]


def _gcn_norm_adj(edge_index, n):
    """Dense normalized adjacency A_hat[dst, src] = d_src^-1/2 * d_dst^-1/2,
    with self-loops added (PyG GCNConv default normalization)."""
    src = edge_index[0]
    dst = edge_index[1]
    self_idx = jnp.arange(n, dtype=edge_index.dtype)
    src = jnp.concatenate([src, self_idx])
    dst = jnp.concatenate([dst, self_idx])
    deg = jnp.zeros((n,), jnp.float32).at[dst].add(1.0)
    dinv = 1.0 / jnp.sqrt(deg)
    w = dinv[src] * dinv[dst]
    a_hat = jnp.zeros((n, n), jnp.float32).at[dst, src].add(w)
    return a_hat


def _prep_per_graph(node_x, edge_index, valid_actions, a_pad):
    """Per-graph preprocessing (cacheable across DQN steps for a static graph):
    transposed normalized adjacency, transposed features, fused/padded one-hot
    selection matrix [N, 2*a_pad]."""
    n = node_x.shape[0]
    num_a = valid_actions.shape[0]
    a_hat_t = _gcn_norm_adj(edge_index, n).T                      # [N, N]
    x_t = node_x.T.astype(jnp.float32)                            # [F, N]
    s_u_t = jax.nn.one_hot(valid_actions[:, 0], n, dtype=jnp.float32).T  # [N, A]
    s_v_t = jax.nn.one_hot(valid_actions[:, 1], n, dtype=jnp.float32).T  # [N, A]
    pad = a_pad - num_a
    s_u_t = jnp.pad(s_u_t, ((0, 0), (0, pad)))
    s_v_t = jnp.pad(s_v_t, ((0, 0), (0, pad)))
    s_cat_t = jnp.concatenate([s_u_t, s_v_t], axis=1)             # [N, 2*a_pad]
    return a_hat_t, x_t, s_cat_t


def shared_embedding_dqn_gnn_forward_batched(params, node_x_b, edge_index_b,
                                             valid_actions_b):
    """Batched forward over B independent graphs / action sets.

    node_x_b:        [B, N, node_input_dim] float32
    edge_index_b:    [B, 2, E] int32
    valid_actions_b: [B, A, 2] int32
    returns:         [B, A] float32 q-values
    """
    bsz, n, f = node_x_b.shape
    num_a = valid_actions_b.shape[1]
    hidden = params["w1"].shape[1]
    a_pad = 128 * ((num_a + 127) // 128)   # lane-dense, 128-aligned output

    # --- glue (plain JAX): adjacency + one-hot gathers, cacheable per graph ---
    prep = jax.vmap(lambda x, ei, va: _prep_per_graph(x, ei, va, a_pad))
    a_hat_t_b, x_t_b, s_cat_t_b = prep(node_x_b, edge_index_b, valid_actions_b)

    # --- shared parameters, pre-transposed / broadcast in the wrapper ---
    w1_t = params["w1"].T                                         # [H, F]
    w2_t = params["w2"].T                                         # [H, H]
    b1_c = params["b1"].reshape(hidden, 1)
    b2_c = params["b2"].reshape(hidden, 1)
    wq_u = params["wq"][:hidden, 0]                               # acts on x[u]
    wq_v = params["wq"][hidden:, 0]                               # acts on x[v]
    wq_cat_t = jnp.concatenate(
        [jnp.broadcast_to(wq_u[:, None], (hidden, a_pad)),
         jnp.broadcast_to(wq_v[:, None], (hidden, a_pad))], axis=1)  # [H, 2*a_pad]
    bq = params["bq"].reshape(1, 1)

    q_pad = pl.pallas_call(
        gnn_q_kernel,
        out_shape=jax.ShapeDtypeStruct((bsz, 1, a_pad), jnp.float32),
        grid=(bsz,),
        in_specs=[
            pl.BlockSpec((None, n, n), lambda i: (i, 0, 0)),           # A_hat^T
            pl.BlockSpec((None, f, n), lambda i: (i, 0, 0)),           # X^T
            pl.BlockSpec((None, n, 2 * a_pad), lambda i: (i, 0, 0)),   # fused one-hot
            pl.BlockSpec((hidden, f), lambda i: (0, 0)),               # W1^T
            pl.BlockSpec((hidden, 1), lambda i: (0, 0)),               # b1
            pl.BlockSpec((hidden, hidden), lambda i: (0, 0)),          # W2^T
            pl.BlockSpec((hidden, 1), lambda i: (0, 0)),               # b2
            pl.BlockSpec((hidden, 2 * a_pad), lambda i: (0, 0)),       # Wq broadcast
            pl.BlockSpec((1, 1), lambda i: (0, 0)),                    # bq
        ],
        out_specs=pl.BlockSpec((None, 1, a_pad), lambda i: (i, 0, 0)),
        compiler_params=pltpu.CompilerParams(
            dimension_semantics=("parallel",)),   # v7x: split batch over 2 TCs
    )(a_hat_t_b, x_t_b, s_cat_t_b, w1_t, b1_c, w2_t, b2_c, wq_cat_t, bq)

    # drop lane padding; torch.cat of per-action [1] tensors -> shape [A]
    return q_pad[:, 0, :num_a]


def shared_embedding_dqn_gnn_forward(params, node_x, edge_index, valid_actions):
    """Single-graph forward, matching SharedEmbeddingDQNGNN.forward."""
    q = shared_embedding_dqn_gnn_forward_batched(
        params, node_x[None], edge_index[None], valid_actions[None])
    return q[0]


def _reference(params, node_x, edge_index, valid_actions):
    """Pure-JAX reference mirroring the PyTorch forward."""
    n = node_x.shape[0]
    a_hat = _gcn_norm_adj(edge_index, n)
    h1 = jax.nn.relu(a_hat @ (node_x @ params["w1"]) + params["b1"])
    h2 = jax.nn.relu(a_hat @ (h1 @ params["w2"]) + params["b2"])
    emb = jnp.concatenate(
        [h2[valid_actions[:, 0]], h2[valid_actions[:, 1]]], axis=-1)
    return emb @ params["wq"][:, 0] + params["bq"][0]


if __name__ == "__main__":
    key = jax.random.PRNGKey(0)
    ks = jax.random.split(key, 10)

    # Small shapes consistent with the module.
    B = 2                   # batch of independent graphs (grid axis, "parallel")
    N = 16                  # number of graph nodes
    NODE_IN = 8             # node_input_dim
    HIDDEN = 32             # hidden_dim
    E = 24                  # number of edges
    A = 8                   # number of valid actions per graph

    params = {
        "w1": 0.1 * jax.random.normal(ks[0], (NODE_IN, HIDDEN), jnp.float32),
        "b1": 0.1 * jax.random.normal(ks[1], (HIDDEN,), jnp.float32),
        "w2": 0.1 * jax.random.normal(ks[2], (HIDDEN, HIDDEN), jnp.float32),
        "b2": 0.1 * jax.random.normal(ks[3], (HIDDEN,), jnp.float32),
        "wq": 0.1 * jax.random.normal(ks[4], (2 * HIDDEN, 1), jnp.float32),
        "bq": 0.1 * jax.random.normal(ks[5], (1,), jnp.float32),
    }

    node_x_b = jax.random.normal(ks[6], (B, N, NODE_IN), jnp.float32)
    edge_index_b = jnp.stack([
        jax.random.randint(ks[7], (B, E), 0, N, dtype=jnp.int32),
        jax.random.randint(ks[8], (B, E), 0, N, dtype=jnp.int32),
    ], axis=1)                                                    # [B, 2, E]
    valid_actions_b = jax.random.randint(ks[9], (B, A, 2), 0, N, dtype=jnp.int32)

    # Batched path (one pallas_call, grid over graphs).
    q_b = shared_embedding_dqn_gnn_forward_batched(
        params, node_x_b, edge_index_b, valid_actions_b)
    q_b = jax.block_until_ready(q_b)
    assert q_b.shape == (B, A), q_b.shape
    for b in range(B):
        q_ref = _reference(params, node_x_b[b], edge_index_b[b],
                           valid_actions_b[b])
        assert jnp.allclose(q_b[b], q_ref, atol=1e-5, rtol=1e-5), (b, q_b[b], q_ref)

    # Single-graph path (matches the PyTorch module's forward signature).
    q0 = shared_embedding_dqn_gnn_forward(
        params, node_x_b[0], edge_index_b[0], valid_actions_b[0])
    q0 = jax.block_until_ready(q0)
    assert q0.shape == (A,), q0.shape
    assert jnp.allclose(q0, q_b[0], atol=1e-5, rtol=1e-5), (q0, q_b[0])

    print("KERNEL_OK")
</pallas_src>

<mosaic_0001>
module attributes {stable_mosaic.version = 11 : i64} {
  func.func @gnn_q_kernel(%arg0: i32, %arg1: memref<1x16x16xf32, #tpu.memory_space<vmem>>, %arg2: memref<1x8x16xf32, #tpu.memory_space<vmem>>, %arg3: memref<1x16x256xf32, #tpu.memory_space<vmem>>, %arg4: memref<32x8xf32, #tpu.memory_space<vmem>>, %arg5: memref<32x1xf32, #tpu.memory_space<vmem>>, %arg6: memref<32x32xf32, #tpu.memory_space<vmem>>, %arg7: memref<32x1xf32, #tpu.memory_space<vmem>>, %arg8: memref<32x256xf32, #tpu.memory_space<vmem>>, %arg9: memref<1x1xf32, #tpu.memory_space<vmem>>, %arg10: memref<1x1x128xf32, #tpu.memory_space<vmem>>) attributes {dimension_semantics = [#tpu.dimension_semantics<parallel>], iteration_bounds = array<i64: 2>, scalar_prefetch = 0 : i64, scratch_operands = 0 : i64, tpu.core_type = #tpu.core_type<tc>, window_params = [{transform_indices = @transform_0, window_bounds = array<i64: 1, 16, 16>}, {transform_indices = @transform_1, window_bounds = array<i64: 1, 8, 16>}, {transform_indices = @transform_2, window_bounds = array<i64: 1, 16, 256>}, {pipeline_mode = #tpu.pipeline_mode<synchronous>, transform_indices = @transform_3, window_bounds = array<i64: 32, 8>}, {pipeline_mode = #tpu.pipeline_mode<synchronous>, transform_indices = @transform_4, window_bounds = array<i64: 32, 1>}, {pipeline_mode = #tpu.pipeline_mode<synchronous>, transform_indices = @transform_5, window_bounds = array<i64: 32, 32>}, {pipeline_mode = #tpu.pipeline_mode<synchronous>, transform_indices = @transform_6, window_bounds = array<i64: 32, 1>}, {pipeline_mode = #tpu.pipeline_mode<synchronous>, transform_indices = @transform_7, window_bounds = array<i64: 32, 256>}, {pipeline_mode = #tpu.pipeline_mode<synchronous>, transform_indices = @transform_8, window_bounds = array<i64: 1, 1>}, {transform_indices = @transform_9, window_bounds = array<i64: 1, 1, 128>}]} {
    %c0 = arith.constant 0 : index
    %c0_0 = arith.constant 0 : index
    %c0_1 = arith.constant 0 : index
    %0 = vector.load %arg1[%c0, %c0_0, %c0_1] : memref<1x16x16xf32, #tpu.memory_space<vmem>>, vector<1x16x16xf32>
    %1 = vector.shape_cast %0 : vector<1x16x16xf32> to vector<16x16xf32>
    %c0_2 = arith.constant 0 : index
    %c0_3 = arith.constant 0 : index
    %2 = vector.load %arg4[%c0_2, %c0_3] : memref<32x8xf32, #tpu.memory_space<vmem>>, vector<32x8xf32>
    %c0_4 = arith.constant 0 : index
    %c0_5 = arith.constant 0 : index
    %c0_6 = arith.constant 0 : index
    %3 = vector.load %arg2[%c0_4, %c0_5, %c0_6] : memref<1x8x16xf32, #tpu.memory_space<vmem>>, vector<1x8x16xf32>
    %4 = vector.shape_cast %3 : vector<1x8x16xf32> to vector<8x16xf32>
    %cst = arith.constant dense<0.000000e+00> : vector<32x16xf32>
    %5 = tpu.matmul %2, %4, %cst {dimension_numbers = #tpu.dot_dimension_numbers<[1], [0], [0], [1], [0, 0, 1, 1], [], []>} : vector<32x8xf32>, vector<8x16xf32>, vector<32x16xf32> -> vector<32x16xf32>
    %cst_7 = arith.constant dense<0.000000e+00> : vector<32x16xf32>
    %6 = tpu.matmul %5, %1, %cst_7 {dimension_numbers = #tpu.dot_dimension_numbers<[1], [0], [0], [1], [0, 0, 1, 1], [], []>} : vector<32x16xf32>, vector<16x16xf32>, vector<32x16xf32> -> vector<32x16xf32>
    %c0_8 = arith.constant 0 : index
    %c0_9 = arith.constant 0 : index
    %7 = vector.load %arg5[%c0_8, %c0_9] : memref<32x1xf32, #tpu.memory_space<vmem>>, vector<32x1xf32>
    %8 = vector.broadcast %7 : vector<32x1xf32> to vector<32x16xf32>
    %9 = arith.addf %6, %8 : vector<32x16xf32>
    %cst_10 = arith.constant 0.000000e+00 : f32
    %10 = vector.broadcast %cst_10 : f32 to vector<32x16xf32>
    %11 = arith.maximumf %9, %10 : vector<32x16xf32>
    %c0_11 = arith.constant 0 : index
    %c0_12 = arith.constant 0 : index
    %12 = vector.load %arg6[%c0_11, %c0_12] : memref<32x32xf32, #tpu.memory_space<vmem>>, vector<32x32xf32>
    %cst_13 = arith.constant dense<0.000000e+00> : vector<32x16xf32>
    %13 = tpu.matmul %12, %11, %cst_13 {dimension_numbers = #tpu.dot_dimension_numbers<[1], [0], [0], [1], [0, 0, 1, 1], [], []>} : vector<32x32xf32>, vector<32x16xf32>, vector<32x16xf32> -> vector<32x16xf32>
    %cst_14 = arith.constant dense<0.000000e+00> : vector<32x16xf32>
    %14 = tpu.matmul %13, %1, %cst_14 {dimension_numbers = #tpu.dot_dimension_numbers<[1], [0], [0], [1], [0, 0, 1, 1], [], []>} : vector<32x16xf32>, vector<16x16xf32>, vector<32x16xf32> -> vector<32x16xf32>
    %c0_15 = arith.constant 0 : index
    %c0_16 = arith.constant 0 : index
    %15 = vector.load %arg7[%c0_15, %c0_16] : memref<32x1xf32, #tpu.memory_space<vmem>>, vector<32x1xf32>
    %16 = vector.broadcast %15 : vector<32x1xf32> to vector<32x16xf32>
    %17 = arith.addf %14, %16 : vector<32x16xf32>
    %cst_17 = arith.constant 0.000000e+00 : f32
    %18 = vector.broadcast %cst_17 : f32 to vector<32x16xf32>
    %19 = arith.maximumf %17, %18 : vector<32x16xf32>
    %c0_18 = arith.constant 0 : index
    %c0_19 = arith.constant 0 : index
    %c0_20 = arith.constant 0 : index
    %20 = vector.load %arg3[%c0_18, %c0_19, %c0_20] : memref<1x16x256xf32, #tpu.memory_space<vmem>>, vector<1x16x256xf32>
    %21 = vector.shape_cast %20 : vector<1x16x256xf32> to vector<16x256xf32>
    %cst_21 = arith.constant dense<0.000000e+00> : vector<32x256xf32>
    %22 = tpu.matmul %19, %21, %cst_21 {dimension_numbers = #tpu.dot_dimension_numbers<[1], [0], [0], [1], [0, 0, 1, 1], [], []>} : vector<32x16xf32>, vector<16x256xf32>, vector<32x256xf32> -> vector<32x256xf32>
    %c0_22 = arith.constant 0 : index
    %c0_23 = arith.constant 0 : index
    %23 = vector.load %arg8[%c0_22, %c0_23] : memref<32x256xf32, #tpu.memory_space<vmem>>, vector<32x256xf32>
    %24 = arith.mulf %22, %23 : vector<32x256xf32>
    %cst_24 = arith.constant dense<0.000000e+00> : vector<256xf32>
    %25 = vector.multi_reduction <add>, %24, %cst_24 [0] : vector<32x256xf32> to vector<256xf32>
    %26 = vector.shape_cast %25 : vector<256xf32> to vector<1x256xf32>
    %27 = vector.extract_strided_slice %26 {offsets = [0, 0], sizes = [1, 128], strides = [1, 1]} : vector<1x256xf32> to vector<1x128xf32>
    %28 = vector.extract_strided_slice %26 {offsets = [0, 128], sizes = [1, 128], strides = [1, 1]} : vector<1x256xf32> to vector<1x128xf32>
    %29 = arith.addf %27, %28 : vector<1x128xf32>
    %c0_25 = arith.constant 0 : index
    %c0_26 = arith.constant 0 : index
    %30 = vector.load %arg9[%c0_25, %c0_26] : memref<1x1xf32, #tpu.memory_space<vmem>>, vector<1x1xf32>
    %31 = vector.broadcast %30 : vector<1x1xf32> to vector<1x128xf32>
    %32 = arith.addf %29, %31 : vector<1x128xf32>
    %c0_27 = arith.constant 0 : index
    %c0_28 = arith.constant 0 : index
    %c0_29 = arith.constant 0 : index
    %33 = vector.load %arg10[%c0_27, %c0_28, %c0_29] : memref<1x1x128xf32, #tpu.memory_space<vmem>>, vector<1x1x128xf32>
    %34 = vector.shape_cast %33 : vector<1x1x128xf32> to vector<1x128xf32>
    %35 = vector.shape_cast %32 : vector<1x128xf32> to vector<1x1x128xf32>
    tpu.vector_store %arg10[%c0_27, %c0_28, %c0_29], %35 {strides = array<i32>} : memref<1x1x128xf32, #tpu.memory_space<vmem>>, vector<1x1x128xf32>,
    return
  }
  func.func @transform_0(%arg0: i32) -> (i32, i32, i32) {
    %c0_i32 = arith.constant 0 : i32
    %c0_i32_0 = arith.constant 0 : i32
    %c0_i32_1 = arith.constant 0 : i32
    return %arg0, %c0_i32, %c0_i32_0 : i32, i32, i32
  }
  func.func @transform_1(%arg0: i32) -> (i32, i32, i32) {
    %c0_i32 = arith.constant 0 : i32
    %c0_i32_0 = arith.constant 0 : i32
    %c0_i32_1 = arith.constant 0 : i32
    return %arg0, %c0_i32, %c0_i32_0 : i32, i32, i32
  }
  func.func @transform_2(%arg0: i32) -> (i32, i32, i32) {
    %c0_i32 = arith.constant 0 : i32
    %c0_i32_0 = arith.constant 0 : i32
    %c0_i32_1 = arith.constant 0 : i32
    return %arg0, %c0_i32, %c0_i32_0 : i32, i32, i32
  }
  func.func @transform_3(%arg0: i32) -> (i32, i32) {
    %c0_i32 = arith.constant 0 : i32
    %c0_i32_0 = arith.constant 0 : i32
    %c0_i32_1 = arith.constant 0 : i32
    return %c0_i32, %c0_i32_0 : i32, i32
  }
  func.func @transform_4(%arg0: i32) -> (i32, i32) {
    %c0_i32 = arith.constant 0 : i32
    %c0_i32_0 = arith.constant 0 : i32
    %c0_i32_1 = arith.constant 0 : i32
    return %c0_i32, %c0_i32_0 : i32, i32
  }
  func.func @transform_5(%arg0: i32) -> (i32, i32) {
    %c0_i32 = arith.constant 0 : i32
    %c0_i32_0 = arith.constant 0 : i32
    %c0_i32_1 = arith.constant 0 : i32
    return %c0_i32, %c0_i32_0 : i32, i32
  }
  func.func @transform_6(%arg0: i32) -> (i32, i32) {
    %c0_i32 = arith.constant 0 : i32
    %c0_i32_0 = arith.constant 0 : i32
    %c0_i32_1 = arith.constant 0 : i32
    return %c0_i32, %c0_i32_0 : i32, i32
  }
  func.func @transform_7(%arg0: i32) -> (i32, i32) {
    %c0_i32 = arith.constant 0 : i32
    %c0_i32_0 = arith.constant 0 : i32
    %c0_i32_1 = arith.constant 0 : i32
    return %c0_i32, %c0_i32_0 : i32, i32
  }
  func.func @transform_8(%arg0: i32) -> (i32, i32) {
    %c0_i32 = arith.constant 0 : i32
    %c0_i32_0 = arith.constant 0 : i32
    %c0_i32_1 = arith.constant 0 : i32
    return %c0_i32, %c0_i32_0 : i32, i32
  }
  func.func @transform_9(%arg0: i32) -> (i32, i32, i32) {
    %c0_i32 = arith.constant 0 : i32
    %c0_i32_0 = arith.constant 0 : i32
    %c0_i32_1 = arith.constant 0 : i32
    return %arg0, %c0_i32, %c0_i32_0 : i32, i32, i32
  }
}

</mosaic_0001>

<llo_original>
// kernel: tpu_custom_call.1
$region0: #{tpu_custom_call.1}
  #allocation0 [shape = 'u32[]', space=smem, size = 0x4, offset = 0x4, fixed_abs, tag = 'smem constant byte address 0x4 - core index']
  #allocation1 [shape = 'u32[144,128]{1,0:T(1,128)}', space=vmem, size = 0x12000, scoped, tag = 'internal scratch']
  #allocation2 [shape = 'f32[1,1]{1,0:T(1,128)S(1)}', space=vmem, size = 0x200, scoped, tag = 'scoped memory for tpu_custom_call.1']
  %s0 = inlined_call_operand.hbm [shape: f32[2,16,16], index: 0, kind: input, shape index: {}]
  %s1 = inlined_call_operand.hbm [shape: f32[2,8,16], index: 1, kind: input, shape index: {}]
  %s2 = inlined_call_operand.vmem [shape: f32[2,16,256], index: 2, kind: input, shape index: {}]
  %s3 = inlined_call_operand.vmem [shape: f32[32,8], index: 3, kind: input, shape index: {}]
  %s4 = inlined_call_operand.vmem [shape: f32[32,1], index: 4, kind: input, shape index: {}]
  %s5 = inlined_call_operand.hbm [shape: f32[32,32], index: 5, kind: input, shape index: {}]
  %s6 = inlined_call_operand.vmem [shape: f32[32,1], index: 6, kind: input, shape index: {}]
  %s7 = inlined_call_operand.vmem [shape: f32[32,256], index: 7, kind: input, shape index: {}]
  %s8 = inlined_call_operand.<no memory space> [shape: f32[1,1], index: 8, kind: input, shape index: {}]
  %s9 = inlined_call_operand.hbm [shape: f32[2,1,128], index: 9, kind: output, shape index: {}]
  %s10 = sld [smem:[#allocation0]]
  $region81: #{tpu_custom_call.1} parent=0
    _
  %s12 = ssub.s32 1, %s10
  %s13 = scalar_select 0, %s12, %s10
  %v14 = vstv %s8
  %15 = vst [vmem:[#allocation2] sm:$0x1] %v14
  $region1: #{tpu_custom_call.1} parent=0
    #allocation3 [shape = 'u8[16384]{0}', space=vmem, size = 0x4000, scoped, tag = 'input window, operand 0']
    #allocation4 [shape = 's32[2]{0}', space=sflag, size = 0x8, scoped, tag = 'scoped memory for tpu_custom_call.1']
    #allocation5 [shape = 's32[2]{0}', space=sflag, size = 0x8, scoped, tag = 'scoped memory for tpu_custom_call.1']
    #allocation6 [shape = 'u8[8192]{0}', space=vmem, size = 0x2000, scoped, tag = 'input window, operand 1']
    #allocation7 [shape = 's32[2]{0}', space=sflag, size = 0x8, scoped, tag = 'scoped memory for tpu_custom_call.1']
    #allocation8 [shape = 'u8[16384]{0}', space=vmem, size = 0x4000, scoped, tag = 'input window, operand 5, single buffered']
    #allocation9 [shape = 'u8[1024]{0}', space=vmem, size = 0x400, scoped, tag = 'output window, operand 0']
    %16 = vsyncpa [#allocation4], 0
    %s17 = scalar_lea.sflag [#allocation4], 1
    %18 = vsyncpa %s17, 0
    %19 = vsyncpa [#allocation7], 0
    %s20 = scalar_lea.sflag [#allocation7], 1
    %21 = vsyncpa %s20, 0
    %22 = vsyncpa [#allocation5], 0
    %s23 = scalar_lea.sflag [#allocation5], 1
    %24 = vsyncpa %s23, 0
    loop: start=0, step=1, limit=4
    $region2: #{tpu_custom_call.1} parent=1 // loop_pre_header
      _
    $region3: #{tpu_custom_call.1} parent=1 // loop_header
      %s26 = sphi 0, %s30
      %p27 = scmp.ge.s32.totalorder %s26, 4
      %s36 = sphi 0, %s38
      %s39 = sphi 0, %s36
      %s40 = sphi 0, %s39
      %s56 = sphi 0, %s40
      %s62 = sphi 0, %s64
      %s65 = sphi 0, %s62
      %s66 = sphi 0, %s65
      %s82 = sphi 0, %s66
      %s88 = sphi 0, %s90
      %s91 = sphi 0, %s88
      %s92 = sphi 0, %s91
      %s108 = sphi 0, %s92
      %s112 = sphi 0, %s112
      %s114 = sphi 0, %s112
      %s115 = sphi 0, %s114
      %s129 = sphi 0, %s115
      %s133 = sphi 0, %s133
      %s135 = sphi 0, %s133
      %s136 = sphi 0, %s135
      %s150 = sphi 0, %s136
      %s154 = sphi 0, %s154
      %s156 = sphi 0, %s154
      %s157 = sphi 0, %s156
      %s171 = sphi 0, %s157
      %s175 = sphi 0, %s175
      %s177 = sphi 0, %s175
      %s178 = sphi 0, %s177
      %s192 = sphi 0, %s178
      %s196 = sphi 0, %s196
      %s198 = sphi 0, %s196
      %s199 = sphi 0, %s198
      %s213 = sphi 0, %s199
      %s217 = sphi 0, %s217
      %s219 = sphi 0, %s217
      %s220 = sphi 0, %s219
      %s234 = sphi 0, %s220
      %s240 = sphi 0, %s242
      %s243 = sphi 0, %s240
      %s244 = sphi 0, %s243
      %s260 = sphi 0, %s244
    $region4: #{tpu_custom_call.1} parent=1 // loop_header_branch
      %29 = sbr.rel (%p27) target = $region8
    $region5: #{tpu_custom_call.1} parent=1 // loop_body
      %s31 = ssub.s32 %s26, 1
      %s32 = ssub.s32 %s26, 2
      %s33 = sadd.s32 %s26, 1
      %s34 = ssub.s32 %s26, %s33
      %p35 = scmp.eq.s32.totalorder %s34, 0
      %s37 = sadd.s32 %s36, 1
      %s38 = scalar_select %p35, %s36, %s37
      %p41 = pneg %p35
      %p42 = scmp.eq.s32.totalorder %s26, 1
      %p43 = por %p41, %p42
      %p44 = scmp.ne.s32.totalorder %s36, %s39
      %p45 = scmp.eq.s32.totalorder %s26, 0
      %p46 = por %p44, %p45
      %p47 = scmp.ne.s32.totalorder %s36, %s39
      %p48 = scmp.eq.s32.totalorder %s31, 1
      %p49 = por %p47, %p48
      %p50 = scmp.ne.s32.totalorder %s39, %s40
      %p51 = scmp.eq.s32.totalorder %s31, 0
      %p52 = por %p50, %p51
      %p53 = scmp.ne.s32.totalorder %s39, %s40
      %p54 = scmp.eq.s32.totalorder %s32, 1
      %p55 = por %p53, %p54
      %p57 = scmp.ne.s32.totalorder %s40, %s56
      %p58 = scmp.eq.s32.totalorder %s32, 0
      %p59 = por %p57, %p58
      %s60 = ssub.s32 %s26, %s33
      %p61 = scmp.eq.s32.totalorder %s60, 0
      %s63 = sadd.s32 %s62, 1
      %s64 = scalar_select %p61, %s62, %s63
      %p67 = pneg %p61
      %p68 = scmp.eq.s32.totalorder %s26, 1
      %p69 = por %p67, %p68
      %p70 = scmp.ne.s32.totalorder %s62, %s65
      %p71 = scmp.eq.s32.totalorder %s26, 0
      %p72 = por %p70, %p71
      %p73 = scmp.ne.s32.totalorder %s62, %s65
      %p74 = scmp.eq.s32.totalorder %s31, 1
      %p75 = por %p73, %p74
      %p76 = scmp.ne.s32.totalorder %s65, %s66
      %p77 = scmp.eq.s32.totalorder %s31, 0
      %p78 = por %p76, %p77
      %p79 = scmp.ne.s32.totalorder %s65, %s66
      %p80 = scmp.eq.s32.totalorder %s32, 1
      %p81 = por %p79, %p80
      %p83 = scmp.ne.s32.totalorder %s66, %s82
      %p84 = scmp.eq.s32.totalorder %s32, 0
      %p85 = por %p83, %p84
      %s86 = ssub.s32 %s26, %s33
      %p87 = scmp.eq.s32.totalorder %s86, 0
      %s89 = sadd.s32 %s88, 1
      %s90 = scalar_select %p87, %s88, %s89
      %p93 = pneg %p87
      %p94 = scmp.eq.s32.totalorder %s26, 1
      %p95 = por %p93, %p94
      %p96 = scmp.ne.s32.totalorder %s88, %s91
      %p97 = scmp.eq.s32.totalorder %s26, 0
      %p98 = por %p96, %p97
      %p99 = scmp.ne.s32.totalorder %s88, %s91
      %p100 = scmp.eq.s32.totalorder %s31, 1
      %p101 = por %p99, %p100
      %p102 = scmp.ne.s32.totalorder %s91, %s92
      %p103 = scmp.eq.s32.totalorder %s31, 0
      %p104 = por %p102, %p103
      %p105 = scmp.ne.s32.totalorder %s91, %s92
      %p106 = scmp.eq.s32.totalorder %s32, 1
      %p107 = por %p105, %p106
      %p109 = scmp.ne.s32.totalorder %s92, %s108
      %p110 = scmp.eq.s32.totalorder %s32, 0
      %p111 = por %p109, %p110
      %s113 = sadd.s32 %s112, 1
      %p116 = scmp.eq.s32.totalorder %s26, 1
      %p117 = scmp.ne.s32.totalorder %s112, %s114
      %p118 = scmp.eq.s32.totalorder %s26, 0
      %p119 = por %p117, %p118
      %p120 = scmp.ne.s32.totalorder %s112, %s114
      %p121 = scmp.eq.s32.totalorder %s31, 1
      %p122 = por %p120, %p121
      %p123 = scmp.ne.s32.totalorder %s114, %s115
      %p124 = scmp.eq.s32.totalorder %s31, 0
      %p125 = por %p123, %p124
      %p126 = scmp.ne.s32.totalorder %s114, %s115
      %p127 = scmp.eq.s32.totalorder %s32, 1
      %p128 = por %p126, %p127
      %p130 = scmp.ne.s32.totalorder %s115, %s129
      %p131 = scmp.eq.s32.totalorder %s32, 0
      %p132 = por %p130, %p131
      %s134 = sadd.s32 %s133, 1
      %p137 = scmp.eq.s32.totalorder %s26, 1
      %p138 = scmp.ne.s32.totalorder %s133, %s135
      %p139 = scmp.eq.s32.totalorder %s26, 0
      %p140 = por %p138, %p139
      %p141 = scmp.ne.s32.totalorder %s133, %s135
      %p142 = scmp.eq.s32.totalorder %s31, 1
      %p143 = por %p141, %p142
      %p144 = scmp.ne.s32.totalorder %s135, %s136
      %p145 = scmp.eq.s32.totalorder %s31, 0
      %p146 = por %p144, %p145
      %p147 = scmp.ne.s32.totalorder %s135, %s136
      %p148 = scmp.eq.s32.totalorder %s32, 1
      %p149 = por %p147, %p148
      %p151 = scmp.ne.s32.totalorder %s136, %s150
      %p152 = scmp.eq.s32.totalorder %s32, 0
      %p153 = por %p151, %p152
      %s155 = sadd.s32 %s154, 1
      %p158 = scmp.eq.s32.totalorder %s26, 1
      %p159 = scmp.ne.s32.totalorder %s154, %s156
      %p160 = scmp.eq.s32.totalorder %s26, 0
      %p161 = por %p159, %p160
      %p162 = scmp.ne.s32.totalorder %s154, %s156
      %p163 = scmp.eq.s32.totalorder %s31, 1
      %p164 = por %p162, %p163
      %p165 = scmp.ne.s32.totalorder %s156, %s157
      %p166 = scmp.eq.s32.totalorder %s31, 0
      %p167 = por %p165, %p166
      %p168 = scmp.ne.s32.totalorder %s156, %s157
      %p169 = scmp.eq.s32.totalorder %s32, 1
      %p170 = por %p168, %p169
      %p172 = scmp.ne.s32.totalorder %s157, %s171
      %p173 = scmp.eq.s32.totalorder %s32, 0
      %p174 = por %p172, %p173
      %s176 = sadd.s32 %s175, 1
      %p179 = scmp.eq.s32.totalorder %s26, 1
      %p180 = scmp.ne.s32.totalorder %s175, %s177
      %p181 = scmp.eq.s32.totalorder %s26, 0
      %p182 = por %p180, %p181
      %p183 = scmp.ne.s32.totalorder %s175, %s177
      %p184 = scmp.eq.s32.totalorder %s31, 1
      %p185 = por %p183, %p184
      %p186 = scmp.ne.s32.totalorder %s177, %s178
      %p187 = scmp.eq.s32.totalorder %s31, 0
      %p188 = por %p186, %p187
      %p189 = scmp.ne.s32.totalorder %s177, %s178
      %p190 = scmp.eq.s32.totalorder %s32, 1
      %p191 = por %p189, %p190
      %p193 = scmp.ne.s32.totalorder %s178, %s192
      %p194 = scmp.eq.s32.totalorder %s32, 0
      %p195 = por %p193, %p194
      %s197 = sadd.s32 %s196, 1
      %p200 = scmp.eq.s32.totalorder %s26, 1
      %p201 = scmp.ne.s32.totalorder %s196, %s198
      %p202 = scmp.eq.s32.totalorder %s26, 0
      %p203 = por %p201, %p202
      %p204 = scmp.ne.s32.totalorder %s196, %s198
      %p205 = scmp.eq.s32.totalorder %s31, 1
      %p206 = por %p204, %p205
      %p207 = scmp.ne.s32.totalorder %s198, %s199
      %p208 = scmp.eq.s32.totalorder %s31, 0
      %p209 = por %p207, %p208
      %p210 = scmp.ne.s32.totalorder %s198, %s199
      %p211 = scmp.eq.s32.totalorder %s32, 1
      %p212 = por %p210, %p211
      %p214 = scmp.ne.s32.totalorder %s199, %s213
      %p215 = scmp.eq.s32.totalorder %s32, 0
      %p216 = por %p214, %p215
      %s218 = sadd.s32 %s217, 1
      %p221 = scmp.eq.s32.totalorder %s26, 1
      %p222 = scmp.ne.s32.totalorder %s217, %s219
      %p223 = scmp.eq.s32.totalorder %s26, 0
      %p224 = por %p222, %p223
      %p225 = scmp.ne.s32.totalorder %s217, %s219
      %p226 = scmp.eq.s32.totalorder %s31, 1
      %p227 = por %p225, %p226
      %p228 = scmp.ne.s32.totalorder %s219, %s220
      %p229 = scmp.eq.s32.totalorder %s31, 0
      %p230 = por %p228, %p229
      %p231 = scmp.ne.s32.totalorder %s219, %s220
      %p232 = scmp.eq.s32.totalorder %s32, 1
      %p233 = por %p231, %p232
      %p235 = scmp.ne.s32.totalorder %s220, %s234
      %p236 = scmp.eq.s32.totalorder %s32, 0
      %p237 = por %p235, %p236
      %s238 = ssub.s32 %s26, %s33
      %p239 = scmp.eq.s32.totalorder %s238, 0
      %s241 = sadd.s32 %s240, 1
      %s242 = scalar_select %p239, %s240, %s241
      %p245 = pneg %p239
      %p246 = scmp.eq.s32.totalorder %s26, 1
      %p247 = por %p245, %p246
      %p248 = scmp.ne.s32.totalorder %s240, %s243
      %p249 = scmp.eq.s32.totalorder %s26, 0
      %p250 = por %p248, %p249
      %p251 = scmp.ne.s32.totalorder %s240, %s243
      %p252 = scmp.eq.s32.totalorder %s31, 1
      %p253 = por %p251, %p252
      %p254 = scmp.ne.s32.totalorder %s243, %s244
      %p255 = scmp.eq.s32.totalorder %s31, 0
      %p256 = por %p254, %p255
      %p257 = scmp.ne.s32.totalorder %s243, %s244
      %p258 = scmp.eq.s32.totalorder %s32, 1
      %p259 = por %p257, %p258
      %p261 = scmp.ne.s32.totalorder %s244, %s260
      %p262 = scmp.eq.s32.totalorder %s32, 0
      %p263 = por %p261, %p262
      %p264 = scmp.le.s32.totalorder 1, %s26
      %p265 = scmp.lt.s32.totalorder %s26, 3
      %p266 = pnand %p264, %p265
      %p267 = pneg %p266
      // Predicated region
      $region9: #{tpu_custom_call.1} parent=5 // pred_check
        _
      $region10: #{tpu_custom_call.1} parent=5 // pred_check_branch
        %269 = sbr.rel (%p266) target = $region12
      $region11: #{tpu_custom_call.1} parent=5 // pred_region
        %s270 = ssub.s32 %s26, 1
        // Predicated region
        $region13: #{tpu_custom_call.1} parent=11 // pred_check
          %p271 = pneg %p125
        $region14: #{tpu_custom_call.1} parent=11 // pred_check_branch
          %273 = sbr.rel (%p271) target = $region16
        $region15: #{tpu_custom_call.1} parent=11 // pred_region
          _
        $region16: #{tpu_custom_call.1} parent=11 // pred_fallthru
          _
        // Predicated region
        $region17: #{tpu_custom_call.1} parent=11 // pred_check
          %p274 = pneg %p146
        $region18: #{tpu_custom_call.1} parent=11 // pred_check_branch
          %276 = sbr.rel (%p274) target = $region20
        $region19: #{tpu_custom_call.1} parent=11 // pred_region
          _
        $region20: #{tpu_custom_call.1} parent=11 // pred_fallthru
          _
        // Predicated region
        $region21: #{tpu_custom_call.1} parent=11 // pred_check
          %p277 = pneg %p167
        $region22: #{tpu_custom_call.1} parent=11 // pred_check_branch
          %279 = sbr.rel (%p277) target = $region24
        $region23: #{tpu_custom_call.1} parent=11 // pred_region
          %s281 = ssub.s32 512, 512
          %282 = vsyncadd [#allocation7], %s281
          %s283 = sshll.u32 [#allocation8], 4
          %s284 = int_to_ptr.vmem [resolvable:$true] %s283
          %289 = dma.hbm_to_vmem [thread:$0]  %s5, 512, %s284, [#allocation7], 128, 128, 8
        $region24: #{tpu_custom_call.1} parent=11 // pred_fallthru
          _
        // Predicated region
        $region25: #{tpu_custom_call.1} parent=11 // pred_check
          %p290 = pneg %p188
        $region26: #{tpu_custom_call.1} parent=11 // pred_check_branch
          %292 = sbr.rel (%p290) target = $region28
        $region27: #{tpu_custom_call.1} parent=11 // pred_region
          _
        $region28: #{tpu_custom_call.1} parent=11 // pred_fallthru
          _
        // Predicated region
        $region29: #{tpu_custom_call.1} parent=11 // pred_check
          %p293 = pneg %p209
        $region30: #{tpu_custom_call.1} parent=11 // pred_check_branch
          %295 = sbr.rel (%p293) target = $region32
        $region31: #{tpu_custom_call.1} parent=11 // pred_region
          _
        $region32: #{tpu_custom_call.1} parent=11 // pred_fallthru
          _
        // Predicated region
        $region33: #{tpu_custom_call.1} parent=11 // pred_check
          %p296 = pneg %p230
        $region34: #{tpu_custom_call.1} parent=11 // pred_check_branch
          %298 = sbr.rel (%p296) target = $region36
        $region35: #{tpu_custom_call.1} parent=11 // pred_region
          _
        $region36: #{tpu_custom_call.1} parent=11 // pred_fallthru
          _
      $region12: #{tpu_custom_call.1} parent=5 // pred_fallthru
        _
      %p299 = scmp.lt.s32.totalorder %s26, 2
      // Predicated region
      $region37: #{tpu_custom_call.1} parent=5 // pred_check
        %p300 = pneg %p299
      $region38: #{tpu_custom_call.1} parent=5 // pred_check_branch
        %302 = sbr.rel (%p300) target = $region40
      $region39: #{tpu_custom_call.1} parent=5 // pred_region
        // Predicated region
        $region41: #{tpu_custom_call.1} parent=39 // pred_check
          %p303 = pneg %p46
        $region42: #{tpu_custom_call.1} parent=39 // pred_check_branch
          %305 = sbr.rel (%p303) target = $region44
        $region43: #{tpu_custom_call.1} parent=39 // pred_region
          %s306 = sand.u32 %s36, 1
          %s307 = scalar_lea.sflag [#allocation4], %s306
          %s308 = sand.u32 %s36, 1
          %s309 = smul.addr %s308, 16
          %s310 = scalar_lea.vmem [#allocation3], %s309
          %s312 = ssub.s32 256, 256
          %313 = vsyncadd %s307, %s312
          %s314 = smul.addr %s26, 2
          %s315 = smul.addr %s314, 128
          %s316 = scalar_lea.hbm %s0, %s315
          %s317 = sshll.u32 %s310, 4
          %s318 = int_to_ptr.vmem [resolvable:$true] %s317
          %323 = dma.hbm_to_vmem [thread:$0]  %s316, 256, %s318, %s307, 128, 128, 8
        $region44: #{tpu_custom_call.1} parent=39 // pred_fallthru
          _
        // Predicated region
        $region45: #{tpu_custom_call.1} parent=39 // pred_check
          %p324 = pneg %p72
        $region46: #{tpu_custom_call.1} parent=39 // pred_check_branch
          %326 = sbr.rel (%p324) target = $region48
        $region47: #{tpu_custom_call.1} parent=39 // pred_region
          %s327 = sand.u32 %s26, 1
          %s328 = scalar_lea.sflag [#allocation7], %s327
          %s329 = sand.u32 %s62, 1
          %s330 = smul.addr %s329, 8
          %s331 = scalar_lea.vmem [#allocation6], %s330
          %s333 = ssub.s32 128, 128
          %334 = vsyncadd %s328, %s333
          %s335 = smul.addr %s26, 128
          %s336 = scalar_lea.hbm %s1, %s335
          %s338 = sshll.u32 %s331, 4
          %s339 = int_to_ptr.vmem [resolvable:$true] %s338
          %341 = dma.hbm_to_vmem [thread:$0]  %s336, 128, %s339, %s328
        $region48: #{tpu_custom_call.1} parent=39 // pred_fallthru
          _
        // Predicated region
        $region49: #{tpu_custom_call.1} parent=39 // pred_check
          %p342 = pneg %p98
        $region50: #{tpu_custom_call.1} parent=39 // pred_check_branch
          %344 = sbr.rel (%p342) target = $region52
        $region51: #{tpu_custom_call.1} parent=39 // pred_region
          %p345 = scmp.lt.s32.totalorder %s26, 1
          %s346 = scalar_select %p345, %s26, 1
          %s347 = smul.addr %s346, 4
          %s348 = smul.addr %s347, 8
          %s349 = scalar_lea.vmem %s2, %s348
        $region52: #{tpu_custom_call.1} parent=39 // pred_fallthru
          _
      $region40: #{tpu_custom_call.1} parent=5 // pred_fallthru
        _
      %p350 = scmp.le.s32.totalorder 1, %s26
      %p351 = scmp.lt.s32.totalorder %s26, 3
      %p352 = pnand %p350, %p351
      %p353 = pneg %p352
      // Predicated region
      $region53: #{tpu_custom_call.1} parent=5 // pred_check
        _
      $region54: #{tpu_custom_call.1} parent=5 // pred_check_branch
        %355 = sbr.rel (%p352) target = $region56
      $region55: #{tpu_custom_call.1} parent=5 // pred_region
        %s356 = ssub.s32 %s26, 1
        %s357 = sand.u32 %s39, 1
        %s358 = scalar_lea.sflag [#allocation4], %s357
        %s359 = sand.u32 %s39, 1
        %s360 = smul.addr %s359, 16
        %s361 = scalar_lea.vmem [#allocation3], %s360
        // Predicated region
        $region57: #{tpu_custom_call.1} parent=55 // pred_check
          %p362 = pneg %p52
        $region58: #{tpu_custom_call.1} parent=55 // pred_check_branch
          %364 = sbr.rel (%p362) target = $region60
        $region59: #{tpu_custom_call.1} parent=55 // pred_region
          %365 = dma.done %s358, 256
        $region60: #{tpu_custom_call.1} parent=55 // pred_fallthru
          _
        %s366 = sand.u32 %s31, 1
        %s367 = scalar_lea.sflag [#allocation7], %s366
        %s368 = sand.u32 %s65, 1
        %s369 = smul.addr %s368, 8
        %s370 = scalar_lea.vmem [#allocation6], %s369
        // Predicated region
        $region61: #{tpu_custom_call.1} parent=55 // pred_check
          %p371 = pneg %p78
        $region62: #{tpu_custom_call.1} parent=55 // pred_check_branch
          %373 = sbr.rel (%p371) target = $region64
        $region63: #{tpu_custom_call.1} parent=55 // pred_region
          %374 = dma.done %s367, 128
        $region64: #{tpu_custom_call.1} parent=55 // pred_fallthru
          _
        // Predicated region
        $region65: #{tpu_custom_call.1} parent=55 // pred_check
          %p375 = pneg %p167
        $region66: #{tpu_custom_call.1} parent=55 // pred_check_branch
          %377 = sbr.rel (%p375) target = $region68
        $region67: #{tpu_custom_call.1} parent=55 // pred_region
          %378 = dma.done [#allocation7], 512
        $region68: #{tpu_custom_call.1} parent=55 // pred_fallthru
          _
        %s379 = sand.u32 %s39, 1
        %s380 = scalar_lea.sflag [#allocation4], %s379
        %s381 = sand.u32 %s39, 1
        %s382 = smul.addr %s381, 16
        %s383 = scalar_lea.vmem [#allocation3], %s382
        %p384 = pneg %p52
        %p385 = pneg %p49
        %s386 = sand.u32 %s31, 1
        %s387 = scalar_lea.sflag [#allocation7], %s386
        %s388 = sand.u32 %s65, 1
        %s389 = smul.addr %s388, 8
        %s390 = scalar_lea.vmem [#allocation6], %s389
        %p391 = pneg %p78
        %p392 = pneg %p75
        %p393 = scmp.lt.s32.totalorder %s31, 1
        %s394 = scalar_select %p393, %s31, 1
        %s395 = smul.addr %s394, 4
        %s396 = smul.addr %s395, 8
        %s397 = scalar_lea.vmem %s2, %s396
        %p398 = pneg %p104
        %p399 = pneg %p101
        %p400 = pneg %p125
        %p401 = pneg %p122
        %p402 = pneg %p146
        %p403 = pneg %p143
        %p404 = pneg %p167
        %p405 = pneg %p164
        %p406 = pneg %p188
        %p407 = pneg %p185
        %p408 = pneg %p209
        %p409 = pneg %p206
        %p410 = pneg %p230
        %p411 = pneg %p227
        %p412 = pneg %p256
        %p413 = pneg %p253
        %s414 = sand.u32 %s243, 1
        %s415 = scalar_lea.sflag [#allocation5], %s414
        %s416 = sand.u32 %s243, 1
        %s417 = scalar_lea.vmem [#allocation9], %s416
        %p418 = scmp.lt.s32.totalorder %s31, 1
        %s419 = scalar_select %p418, %s31, 1
        %s420 = smul.addr %s419, 4
        %s421 = smul.addr %s420, 8
        %s422 = scalar_lea.vmem %s2, %s421
        %v423 = vld [vmem:[%s361] sm:$0xff]
        %v424 = vld [vmem:[%s361 + $0x8] sm:$0xff]
        %v425 = vld [vmem:[%s3] sm:$0xff]
        %v426 = vld [vmem:[%s3 + $0x8] sm:$0xff]
        %v427 = vld [vmem:[%s3 + $0x10] sm:$0xff]
        %v428 = vld [vmem:[%s3 + $0x18] sm:$0xff]
        %v429 = vld [vmem:[%s370] sm:$0xff]
        %vm430 = vcmask 64512
        %v432 = vsel %vm430, %v425, 0
        %v435 = vsel %vm430, %v426, 0
        %v438 = vsel %vm430, %v427, 0
        %v441 = vsel %vm430, %v428, 0
        %443 = vmatprep.subr.mxu0 0.0
        %444 = vmatpush1.msra.mxu0 %v429
        %445 = vmatprep.subr.mxu0 0.0
        %446 = vmatpush1.msra.mxu0 0.0
        %447 = vmatprep.subr.mxu0 0.0
        %448 = vmatpush1.msra.mxu0 0.0
        %449 = vmatprep.subr.mxu0 0.0
        %450 = vmatpush1.msra.mxu0 0.0
        %451 = vmatprep.subr.mxu0 0.0
        %452 = vmatpush1.msra.mxu0 0.0
        %453 = vmatprep.subr.mxu0 0.0
        %454 = vmatpush1.msra.mxu0 0.0
        %455 = vmatprep.subr.mxu0 0.0
        %456 = vmatpush1.msra.mxu0 0.0
        %457 = vmatprep.subr.mxu0 0.0
        %458 = vmatpush1.msra.mxu0 0.0
        %459 = vmatprep.subr.mxu0 0.0
        %460 = vmatpush1.msra.mxu0 0.0
        %461 = vmatprep.subr.mxu0 0.0
        %462 = vmatpush1.msra.mxu0 0.0
        %463 = vmatprep.subr.mxu0 0.0
        %464 = vmatpush1.msra.mxu0 0.0
        %465 = vmatprep.subr.mxu0 0.0
        %466 = vmatpush1.msra.mxu0 0.0
        %467 = vmatprep.subr.mxu0 0.0
        %468 = vmatpush1.msra.mxu0 0.0
        %469 = vmatprep.subr.mxu0 0.0
        %470 = vmatpush1.msra.mxu0 0.0
        %471 = vmatprep.subr.mxu0 0.0
        %472 = vmatpush1.msra.mxu0 0.0
        %473 = vmatprep.subr.mxu0 0.0
        %474 = vmatpush1.msra.mxu0 0.0
        %475 = vmatprep.subr.mxu0 0.0
        %476 = vmatpush1.msra.mxu0 0.0
        %477 = vmatprep.subr.mxu0 0.0
        %478 = vmatpush1.msra.mxu0 0.0
        %479 = vmatprep.subr.mxu0 0.0
        %480 = vmatpush1.msra.mxu0 0.0
        %481 = vmatprep.subr.mxu0 0.0
        %482 = vmatpush1.msra.mxu0 0.0
        %483 = vmatprep.subr.mxu0 0.0
        %484 = vmatpush1.msra.mxu0 0.0
        %485 = vmatprep.subr.mxu0 0.0
        %486 = vmatpush1.msra.mxu0 0.0
        %487 = vmatprep.subr.mxu0 0.0
        %488 = vmatpush1.msra.mxu0 0.0
        %489 = vmatprep.subr.mxu0 0.0
        %490 = vmatpush1.msra.mxu0 0.0
        %491 = vmatprep.subr.mxu0 0.0
        %492 = vmatpush1.msra.mxu0 0.0
        %493 = vmatprep.subr.mxu0 0.0
        %494 = vmatpush1.msra.mxu0 0.0
        %495 = vmatprep.subr.mxu0 0.0
        %496 = vmatpush1.msra.mxu0 0.0
        %497 = vmatprep.subr.mxu0 0.0
        %498 = vmatpush1.msra.mxu0 0.0
        %499 = vmatprep.subr.mxu0 0.0
        %500 = vmatpush1.msra.mxu0 0.0
        %501 = vmatprep.subr.mxu0 0.0
        %502 = vmatpush1.msra.mxu0 0.0
        %503 = vmatprep.subr.mxu0 0.0
        %504 = vmatpush1.msra.mxu0 0.0
        %505 = vmatprep.subr.mxu0 0.0
        %506 = vmatpush1.msra.mxu0 0.0
        %507 = vmatprep.mubr.f32.mxu0 0.0
        %508 = vmatmul.mubr.f32.gmra.mrb[0].mxu0 %v432
        %v509 = vpop.f32.mrb[0].mxu0
        %v510 = vadd.f32 0.0, %v509
        %v511 = vpop.f32.mrb[0].mxu0
        %512 = vmatprep.mubr.f32.mxu0 0.0
        %513 = vmatmul.mubr.f32.gmra.mrb[0].mxu0 %v435
        %v514 = vpop.f32.mrb[0].mxu0
        %v515 = vadd.f32 0.0, %v514
        %v516 = vpop.f32.mrb[0].mxu0
        %517 = vmatprep.mubr.f32.mxu0 0.0
        %518 = vmatmul.mubr.f32.gmra.mrb[0].mxu0 %v438
        %v519 = vpop.f32.mrb[0].mxu0
        %v520 = vadd.f32 0.0, %v519
        %v521 = vpop.f32.mrb[0].mxu0
        %522 = vmatprep.mubr.f32.mxu0 0.0
        %523 = vmatmul.mubr.f32.gmra.mrb[0].mxu0 %v441
        %v524 = vpop.f32.mrb[0].mxu0
        %v525 = vadd.f32 0.0, %v524
        %v526 = vpop.f32.mrb[0].mxu0
        %527 = vdwg.mxu0
        %v528 = vld [vmem:[%s4] sm:$0xff]
        %v529 = vld [vmem:[%s4 + $0x8] sm:$0xff]
        %v530 = vld [vmem:[%s4 + $0x10] sm:$0xff]
        %v531 = vld [vmem:[%s4 + $0x18] sm:$0xff]
        %533 = vset.pattern.permute.xlu0 0
        %534 = vperm.xlu0 %533, %v528
        %v535 = vpop.permute.xlu0 %534
        %538 = vset.pattern.permute.xlu0 0
        %539 = vperm.xlu0 %538, %v529
        %v540 = vpop.permute.xlu0 %539
        %543 = vset.pattern.permute.xlu0 0
        %544 = vperm.xlu0 %543, %v530
        %v545 = vpop.permute.xlu0 %544
        %548 = vset.pattern.permute.xlu0 0
        %549 = vperm.xlu0 %548, %v531
        %v550 = vpop.permute.xlu0 %549
        %vm552 = vcmask 130048
        %v554 = vsel %vm552, %v510, 0
        %v557 = vsel %vm552, %v515, 0
        %v560 = vsel %vm552, %v520, 0
        %v563 = vsel %vm552, %v525, 0
        %565 = vmatprep.subr.mxu0 0.0
        %566 = vmatpush1.msra.mxu0 %v423
        %567 = vmatprep.subr.mxu0 0.0
        %568 = vmatpush1.msra.mxu0 %v424
        %569 = vmatprep.subr.mxu0 0.0
        %570 = vmatpush1.msra.mxu0 0.0
        %571 = vmatprep.subr.mxu0 0.0
        %572 = vmatpush1.msra.mxu0 0.0
        %573 = vmatprep.subr.mxu0 0.0
        %574 = vmatpush1.msra.mxu0 0.0
        %575 = vmatprep.subr.mxu0 0.0
        %576 = vmatpush1.msra.mxu0 0.0
        %577 = vmatprep.subr.mxu0 0.0
        %578 = vmatpush1.msra.mxu0 0.0
        %579 = vmatprep.subr.mxu0 0.0
        %580 = vmatpush1.msra.mxu0 0.0
        %581 = vmatprep.subr.mxu0 0.0
        %582 = vmatpush1.msra.mxu0 0.0
        %583 = vmatprep.subr.mxu0 0.0
        %584 = vmatpush1.msra.mxu0 0.0
        %585 = vmatprep.subr.mxu0 0.0
        %586 = vmatpush1.msra.mxu0 0.0
        %587 = vmatprep.subr.mxu0 0.0
        %588 = vmatpush1.msra.mxu0 0.0
        %589 = vmatprep.subr.mxu0 0.0
        %590 = vmatpush1.msra.mxu0 0.0
        %591 = vmatprep.subr.mxu0 0.0
        %592 = vmatpush1.msra.mxu0 0.0
        %593 = vmatprep.subr.mxu0 0.0
        %594 = vmatpush1.msra.mxu0 0.0
        %595 = vmatprep.subr.mxu0 0.0
        %596 = vmatpush1.msra.mxu0 0.0
        %597 = vmatprep.subr.mxu0 0.0
        %598 = vmatpush1.msra.mxu0 0.0
        %599 = vmatprep.subr.mxu0 0.0
        %600 = vmatpush1.msra.mxu0 0.0
        %601 = vmatprep.subr.mxu0 0.0
        %602 = vmatpush1.msra.mxu0 0.0
        %603 = vmatprep.subr.mxu0 0.0
        %604 = vmatpush1.msra.mxu0 0.0
        %605 = vmatprep.subr.mxu0 0.0
        %606 = vmatpush1.msra.mxu0 0.0
        %607 = vmatprep.subr.mxu0 0.0
        %608 = vmatpush1.msra.mxu0 0.0
        %609 = vmatprep.subr.mxu0 0.0
        %610 = vmatpush1.msra.mxu0 0.0
        %611 = vmatprep.subr.mxu0 0.0
        %612 = vmatpush1.msra.mxu0 0.0
        %613 = vmatprep.subr.mxu0 0.0
        %614 = vmatpush1.msra.mxu0 0.0
        %615 = vmatprep.subr.mxu0 0.0
        %616 = vmatpush1.msra.mxu0 0.0
        %617 = vmatprep.subr.mxu0 0.0
        %618 = vmatpush1.msra.mxu0 0.0
        %619 = vmatprep.subr.mxu0 0.0
        %620 = vmatpush1.msra.mxu0 0.0
        %621 = vmatprep.subr.mxu0 0.0
        %622 = vmatpush1.msra.mxu0 0.0
        %623 = vmatprep.subr.mxu0 0.0
        %624 = vmatpush1.msra.mxu0 0.0
        %625 = vmatprep.subr.mxu0 0.0
        %626 = vmatpush1.msra.mxu0 0.0
        %627 = vmatprep.subr.mxu0 0.0
        %628 = vmatpush1.msra.mxu0 0.0
        %629 = vmatprep.mubr.f32.mxu0 0.0
        %630 = vmatmul.mubr.f32.gmra.mrb[0].mxu0 %v554
        %v631 = vpop.f32.mrb[0].mxu0
        %v632 = vadd.f32 %v535, %v631
        %v633 = vpop.f32.mrb[0].mxu0
        %634 = vmatprep.mubr.f32.mxu0 0.0
        %635 = vmatmul.mubr.f32.gmra.mrb[0].mxu0 %v557
        %v636 = vpop.f32.mrb[0].mxu0
        %v637 = vadd.f32 %v540, %v636
        %v638 = vpop.f32.mrb[0].mxu0
        %639 = vmatprep.mubr.f32.mxu0 0.0
        %640 = vmatmul.mubr.f32.gmra.mrb[0].mxu0 %v560
        %v641 = vpop.f32.mrb[0].mxu0
        %v642 = vadd.f32 %v545, %v641
        %v643 = vpop.f32.mrb[0].mxu0
        %644 = vmatprep.mubr.f32.mxu0 0.0
        %645 = vmatmul.mubr.f32.gmra.mrb[0].mxu0 %v563
        %v646 = vpop.f32.mrb[0].mxu0
        %v647 = vadd.f32 %v550, %v646
        %v648 = vpop.f32.mrb[0].mxu0
        %649 = vdwg.mxu0
        %v650 = vmax.f32 %v632, 0.0
        %v651 = vmax.f32 %v637, 0.0
        %v652 = vmax.f32 %v642, 0.0
        %v653 = vmax.f32 %v647, 0.0
        %v654 = vld [vmem:[#allocation8] sm:$0xff]
        %v655 = vld [vmem:[#allocation8 + $0x8] sm:$0xff]
        %v656 = vld [vmem:[#allocation8 + $0x10] sm:$0xff]
        %v657 = vld [vmem:[#allocation8 + $0x18] sm:$0xff]
        %vm658 = vcmask 261120
        %v660 = vsel %vm658, %v654, 0
        %v663 = vsel %vm658, %v655, 0
        %v666 = vsel %vm658, %v656, 0
        %v669 = vsel %vm658, %v657, 0
        %671 = vmatprep.subr.mxu0 0.0
        %672 = vmatpush1.msra.mxu0 %v650
        %673 = vmatprep.subr.mxu0 0.0
        %674 = vmatpush1.msra.mxu0 %v651
        %675 = vmatprep.subr.mxu0 0.0
        %676 = vmatpush1.msra.mxu0 %v652
        %677 = vmatprep.subr.mxu0 0.0
        %678 = vmatpush1.msra.mxu0 %v653
        %679 = vmatprep.subr.mxu0 0.0
        %680 = vmatpush1.msra.mxu0 0.0
        %681 = vmatprep.subr.mxu0 0.0
        %682 = vmatpush1.msra.mxu0 0.0
        %683 = vmatprep.subr.mxu0 0.0
        %684 = vmatpush1.msra.mxu0 0.0
        %685 = vmatprep.subr.mxu0 0.0
        %686 = vmatpush1.msra.mxu0 0.0
        %687 = vmatprep.subr.mxu0 0.0
        %688 = vmatpush1.msra.mxu0 0.0
        %689 = vmatprep.subr.mxu0 0.0
        %690 = vmatpush1.msra.mxu0 0.0
        %691 = vmatprep.subr.mxu0 0.0
        %692 = vmatpush1.msra.mxu0 0.0
        %693 = vmatprep.subr.mxu0 0.0
        %694 = vmatpush1.msra.mxu0 0.0
        %695 = vmatprep.subr.mxu0 0.0
        %696 = vmatpush1.msra.mxu0 0.0
        %697 = vmatprep.subr.mxu0 0.0
        %698 = vmatpush1.msra.mxu0 0.0
        %699 = vmatprep.subr.mxu0 0.0
        %700 = vmatpush1.msra.mxu0 0.0
        %701 = vmatprep.subr.mxu0 0.0
        %702 = vmatpush1.msra.mxu0 0.0
        %703 = vmatprep.subr.mxu0 0.0
        %704 = vmatpush1.msra.mxu0 0.0
        %705 = vmatprep.subr.mxu0 0.0
        %706 = vmatpush1.msra.mxu0 0.0
        %707 = vmatprep.subr.mxu0 0.0
        %708 = vmatpush1.msra.mxu0 0.0
        %709 = vmatprep.subr.mxu0 0.0
        %710 = vmatpush1.msra.mxu0 0.0
        %711 = vmatprep.subr.mxu0 0.0
        %712 = vmatpush1.msra.mxu0 0.0
        %713 = vmatprep.subr.mxu0 0.0
        %714 = vmatpush1.msra.mxu0 0.0
        %715 = vmatprep.subr.mxu0 0.0
        %716 = vmatpush1.msra.mxu0 0.0
        %717 = vmatprep.subr.mxu0 0.0
        %718 = vmatpush1.msra.mxu0 0.0
        %719 = vmatprep.subr.mxu0 0.0
        %720 = vmatpush1.msra.mxu0 0.0
        %721 = vmatprep.subr.mxu0 0.0
        %722 = vmatpush1.msra.mxu0 0.0
        %723 = vmatprep.subr.mxu0 0.0
        %724 = vmatpush1.msra.mxu0 0.0
        %725 = vmatprep.subr.mxu0 0.0
        %726 = vmatpush1.msra.mxu0 0.0
        %727 = vmatprep.subr.mxu0 0.0
        %728 = vmatpush1.msra.mxu0 0.0
        %729 = vmatprep.subr.mxu0 0.0
        %730 = vmatpush1.msra.mxu0 0.0
        %731 = vmatprep.subr.mxu0 0.0
        %732 = vmatpush1.msra.mxu0 0.0
        %733 = vmatprep.subr.mxu0 0.0
        %734 = vmatpush1.msra.mxu0 0.0
        %735 = vmatprep.mubr.f32.mxu0 0.0
        %736 = vmatmul.mubr.f32.gmra.mrb[0].mxu0 %v660
        %v737 = vpop.f32.mrb[0].mxu0
        %v738 = vadd.f32 0.0, %v737
        %v739 = vpop.f32.mrb[0].mxu0
        %740 = vmatprep.mubr.f32.mxu0 0.0
        %741 = vmatmul.mubr.f32.gmra.mrb[0].mxu0 %v663
        %v742 = vpop.f32.mrb[0].mxu0
        %v743 = vadd.f32 0.0, %v742
        %v744 = vpop.f32.mrb[0].mxu0
        %745 = vmatprep.mubr.f32.mxu0 0.0
        %746 = vmatmul.mubr.f32.gmra.mrb[0].mxu0 %v666
        %v747 = vpop.f32.mrb[0].mxu0
        %v748 = vadd.f32 0.0, %v747
        %v749 = vpop.f32.mrb[0].mxu0
        %750 = vmatprep.mubr.f32.mxu0 0.0
        %751 = vmatmul.mubr.f32.gmra.mrb[0].mxu0 %v669
        %v752 = vpop.f32.mrb[0].mxu0
        %v753 = vadd.f32 0.0, %v752
        %v754 = vpop.f32.mrb[0].mxu0
        %755 = vdwg.mxu0
        %v756 = vld [vmem:[%s6] sm:$0xff]
        %v757 = vld [vmem:[%s6 + $0x8] sm:$0xff]
        %v758 = vld [vmem:[%s6 + $0x10] sm:$0xff]
        %v759 = vld [vmem:[%s6 + $0x18] sm:$0xff]
        %761 = vset.pattern.permute.xlu0 0
        %762 = vperm.xlu0 %761, %v756
        %v763 = vpop.permute.xlu0 %762
        %766 = vset.pattern.permute.xlu0 0
        %767 = vperm.xlu0 %766, %v757
        %v768 = vpop.permute.xlu0 %767
        %771 = vset.pattern.permute.xlu0 0
        %772 = vperm.xlu0 %771, %v758
        %v773 = vpop.permute.xlu0 %772
        %776 = vset.pattern.permute.xlu0 0
        %777 = vperm.xlu0 %776, %v759
        %v778 = vpop.permute.xlu0 %777
        %v781 = vsel %vm552, %v738, 0
        %v784 = vsel %vm552, %v743, 0
        %v787 = vsel %vm552, %v748, 0
        %v790 = vsel %vm552, %v753, 0
        %792 = vmatprep.subr.mxu0 0.0
        %793 = vmatpush1.msra.mxu0 %v423
        %794 = vmatprep.subr.mxu0 0.0
        %795 = vmatpush1.msra.mxu0 %v424
        %796 = vmatprep.subr.mxu0 0.0
        %797 = vmatpush1.msra.mxu0 0.0
        %798 = vmatprep.subr.mxu0 0.0
        %799 = vmatpush1.msra.mxu0 0.0
        %800 = vmatprep.subr.mxu0 0.0
        %801 = vmatpush1.msra.mxu0 0.0
        %802 = vmatprep.subr.mxu0 0.0
        %803 = vmatpush1.msra.mxu0 0.0
        %804 = vmatprep.subr.mxu0 0.0
        %805 = vmatpush1.msra.mxu0 0.0
        %806 = vmatprep.subr.mxu0 0.0
        %807 = vmatpush1.msra.mxu0 0.0
        %808 = vmatprep.subr.mxu0 0.0
        %809 = vmatpush1.msra.mxu0 0.0
        %810 = vmatprep.subr.mxu0 0.0
        %811 = vmatpush1.msra.mxu0 0.0
        %812 = vmatprep.subr.mxu0 0.0
        %813 = vmatpush1.msra.mxu0 0.0
        %814 = vmatprep.subr.mxu0 0.0
        %815 = vmatpush1.msra.mxu0 0.0
        %816 = vmatprep.subr.mxu0 0.0
        %817 = vmatpush1.msra.mxu0 0.0
        %818 = vmatprep.subr.mxu0 0.0
        %819 = vmatpush1.msra.mxu0 0.0
        %820 = vmatprep.subr.mxu0 0.0
        %821 = vmatpush1.msra.mxu0 0.0
        %822 = vmatprep.subr.mxu0 0.0
        %823 = vmatpush1.msra.mxu0 0.0
        %824 = vmatprep.subr.mxu0 0.0
        %825 = vmatpush1.msra.mxu0 0.0
        %826 = vmatprep.subr.mxu0 0.0
        %827 = vmatpush1.msra.mxu0 0.0
        %828 = vmatprep.subr.mxu0 0.0
        %829 = vmatpush1.msra.mxu0 0.0
        %830 = vmatprep.subr.mxu0 0.0
        %831 = vmatpush1.msra.mxu0 0.0
        %832 = vmatprep.subr.mxu0 0.0
        %833 = vmatpush1.msra.mxu0 0.0
        %834 = vmatprep.subr.mxu0 0.0
        %835 = vmatpush1.msra.mxu0 0.0
        %836 = vmatprep.subr.mxu0 0.0
        %837 = vmatpush1.msra.mxu0 0.0
        %838 = vmatprep.subr.mxu0 0.0
        %839 = vmatpush1.msra.mxu0 0.0
        %840 = vmatprep.subr.mxu0 0.0
        %841 = vmatpush1.msra.mxu0 0.0
        %842 = vmatprep.subr.mxu0 0.0
        %843 = vmatpush1.msra.mxu0 0.0
        %844 = vmatprep.subr.mxu0 0.0
        %845 = vmatpush1.msra.mxu0 0.0
        %846 = vmatprep.subr.mxu0 0.0
        %847 = vmatpush1.msra.mxu0 0.0
        %848 = vmatprep.subr.mxu0 0.0
        %849 = vmatpush1.msra.mxu0 0.0
        %850 = vmatprep.subr.mxu0 0.0
        %851 = vmatpush1.msra.mxu0 0.0
        %852 = vmatprep.subr.mxu0 0.0
        %853 = vmatpush1.msra.mxu0 0.0
        %854 = vmatprep.subr.mxu0 0.0
        %855 = vmatpush1.msra.mxu0 0.0
        %856 = vmatprep.mubr.f32.mxu0 0.0
        %857 = vmatmul.mubr.f32.gmra.mrb[0].mxu0 %v781
        %v858 = vpop.f32.mrb[0].mxu0
        %v859 = vadd.f32 %v763, %v858
        %v860 = vpop.f32.mrb[0].mxu0
        %861 = vmatprep.mubr.f32.mxu0 0.0
        %862 = vmatmul.mubr.f32.gmra.mrb[0].mxu0 %v784
        %v863 = vpop.f32.mrb[0].mxu0
        %v864 = vadd.f32 %v768, %v863
        %v865 = vpop.f32.mrb[0].mxu0
        %866 = vmatprep.mubr.f32.mxu0 0.0
        %867 = vmatmul.mubr.f32.gmra.mrb[0].mxu0 %v787
        %v868 = vpop.f32.mrb[0].mxu0
        %v869 = vadd.f32 %v773, %v868
        %v870 = vpop.f32.mrb[0].mxu0
        %871 = vmatprep.mubr.f32.mxu0 0.0
        %872 = vmatmul.mubr.f32.gmra.mrb[0].mxu0 %v790
        %v873 = vpop.f32.mrb[0].mxu0
        %v874 = vadd.f32 %v778, %v873
        %v875 = vpop.f32.mrb[0].mxu0
        %876 = vdwg.mxu0
        %v877 = vmax.f32 %v859, 0.0
        %v878 = vmax.f32 %v864, 0.0
        %v879 = vmax.f32 %v869, 0.0
        %v880 = vmax.f32 %v874, 0.0
        %v881 = vld [vmem:[%s422] sm:$0xff]
        %v882 = vld [vmem:[%s422 + $0x8] sm:$0xff]
        %v883 = vld [vmem:[%s422 + $0x10] sm:$0xff]
        %v884 = vld [vmem:[%s422 + $0x18] sm:$0xff]
        %v886 = vsel %vm552, %v877, 0
        %v889 = vsel %vm552, %v878, 0
        %v892 = vsel %vm552, %v879, 0
        %v895 = vsel %vm552, %v880, 0
        %897 = vmatprep.subr.mxu0 %v882
        %898 = vmatpush1.msra.mxu0 %v881
        %899 = vmatprep.subr.mxu0 %v884
        %900 = vmatpush1.msra.mxu0 %v883
        %901 = vmatprep.subr.mxu0 0.0
        %902 = vmatpush1.msra.mxu0 0.0
        %903 = vmatprep.subr.mxu0 0.0
        %904 = vmatpush1.msra.mxu0 0.0
        %905 = vmatprep.subr.mxu0 0.0
        %906 = vmatpush1.msra.mxu0 0.0
        %907 = vmatprep.subr.mxu0 0.0
        %908 = vmatpush1.msra.mxu0 0.0
        %909 = vmatprep.subr.mxu0 0.0
        %910 = vmatpush1.msra.mxu0 0.0
        %911 = vmatprep.subr.mxu0 0.0
        %912 = vmatpush1.msra.mxu0 0.0
        %913 = vmatprep.subr.mxu0 0.0
        %914 = vmatpush1.msra.mxu0 0.0
        %915 = vmatprep.subr.mxu0 0.0
        %916 = vmatpush1.msra.mxu0 0.0
        %917 = vmatprep.subr.mxu0 0.0
        %918 = vmatpush1.msra.mxu0 0.0
        %919 = vmatprep.subr.mxu0 0.0
        %920 = vmatpush1.msra.mxu0 0.0
        %921 = vmatprep.subr.mxu0 0.0
        %922 = vmatpush1.msra.mxu0 0.0
        %923 = vmatprep.subr.mxu0 0.0
        %924 = vmatpush1.msra.mxu0 0.0
        %925 = vmatprep.subr.mxu0 0.0
        %926 = vmatpush1.msra.mxu0 0.0
        %927 = vmatprep.subr.mxu0 0.0
        %928 = vmatpush1.msra.mxu0 0.0
        %929 = vmatprep.subr.mxu0 0.0
        %930 = vmatpush1.msra.mxu0 0.0
        %931 = vmatprep.subr.mxu0 0.0
        %932 = vmatpush1.msra.mxu0 0.0
        %933 = vmatprep.subr.mxu0 0.0
        %934 = vmatpush1.msra.mxu0 0.0
        %935 = vmatprep.subr.mxu0 0.0
        %936 = vmatpush1.msra.mxu0 0.0
        %937 = vmatprep.subr.mxu0 0.0
        %938 = vmatpush1.msra.mxu0 0.0
        %939 = vmatprep.subr.mxu0 0.0
        %940 = vmatpush1.msra.mxu0 0.0
        %941 = vmatprep.subr.mxu0 0.0
        %942 = vmatpush1.msra.mxu0 0.0
        %943 = vmatprep.subr.mxu0 0.0
        %944 = vmatpush1.msra.mxu0 0.0
        %945 = vmatprep.subr.mxu0 0.0
        %946 = vmatpush1.msra.mxu0 0.0
        %947 = vmatprep.subr.mxu0 0.0
        %948 = vmatpush1.msra.mxu0 0.0
        %949 = vmatprep.subr.mxu0 0.0
        %950 = vmatpush1.msra.mxu0 0.0
        %951 = vmatprep.subr.mxu0 0.0
        %952 = vmatpush1.msra.mxu0 0.0
        %953 = vmatprep.subr.mxu0 0.0
        %954 = vmatpush1.msra.mxu0 0.0
        %955 = vmatprep.subr.mxu0 0.0
        %956 = vmatpush1.msra.mxu0 0.0
        %957 = vmatprep.subr.mxu0 0.0
        %958 = vmatpush1.msra.mxu0 0.0
        %959 = vmatprep.subr.mxu0 0.0
        %960 = vmatpush1.msra.mxu0 0.0
        %961 = vmatprep.mubr.f32.mxu0 0.0
        %962 = vmatmul.mubr.f32.gmra.mrb[0].mxu0 %v886
        %v963 = vpop.f32.mrb[0].mxu0
        %v964 = vadd.f32 0.0, %v963
        %v965 = vpop.f32.mrb[0].mxu0
        %v966 = vadd.f32 0.0, %v965
        %967 = vmatprep.mubr.f32.mxu0 0.0
        %968 = vmatmul.mubr.f32.gmra.mrb[0].mxu0 %v889
        %v969 = vpop.f32.mrb[0].mxu0
        %v970 = vadd.f32 0.0, %v969
        %v971 = vpop.f32.mrb[0].mxu0
        %v972 = vadd.f32 0.0, %v971
        %973 = vmatprep.mubr.f32.mxu0 0.0
        %974 = vmatmul.mubr.f32.gmra.mrb[0].mxu0 %v892
        %v975 = vpop.f32.mrb[0].mxu0
        %v976 = vadd.f32 0.0, %v975
        %v977 = vpop.f32.mrb[0].mxu0
        %v978 = vadd.f32 0.0, %v977
        %979 = vmatprep.mubr.f32.mxu0 0.0
        %980 = vmatmul.mubr.f32.gmra.mrb[0].mxu0 %v895
        %v981 = vpop.f32.mrb[0].mxu0
        %v982 = vadd.f32 0.0, %v981
        %v983 = vpop.f32.mrb[0].mxu0
        %v984 = vadd.f32 0.0, %v983
        %985 = vdwg.mxu0
        %v986 = vld [vmem:[%s7] sm:$0xff]
        %v987 = vld [vmem:[%s7 + $0x8] sm:$0xff]
        %v988 = vld [vmem:[%s7 + $0x10] sm:$0xff]
        %v989 = vld [vmem:[%s7 + $0x18] sm:$0xff]
        %v990 = vld [vmem:[%s7 + $0x20] sm:$0xff]
        %v991 = vld [vmem:[%s7 + $0x28] sm:$0xff]
        %v992 = vld [vmem:[%s7 + $0x30] sm:$0xff]
        %v993 = vld [vmem:[%s7 + $0x38] sm:$0xff]
        %v994 = vmul.f32 %v964, %v986
        %v995 = vmul.f32 %v966, %v987
        %v996 = vmul.f32 %v970, %v988
        %v997 = vmul.f32 %v972, %v989
        %v998 = vmul.f32 %v976, %v990
        %v999 = vmul.f32 %v978, %v991
        %v1000 = vmul.f32 %v982, %v992
        %v1001 = vmul.f32 %v984, %v993
        %v1002 = vadd.f32 %v994, %v996
        %v1003 = vadd.f32 %v1002, %v998
        %v1004 = vadd.f32 %v1003, %v1000
        %v1005 = vrot.slane %v1004, 4
        %v1006 = vadd.f32 %v1004, %v1005
        %v1007 = vrot.slane %v1006, 2
        %v1008 = vadd.f32 %v1006, %v1007
        %v1009 = vrot.slane %v1008, 1
        %v1010 = vadd.f32 %v1008, %v1009
        %v1011 = vadd.f32 %v995, %v997
        %v1012 = vadd.f32 %v1011, %v999
        %v1013 = vadd.f32 %v1012, %v1001
        %v1014 = vrot.slane %v1013, 4
        %v1015 = vadd.f32 %v1013, %v1014
        %v1016 = vrot.slane %v1015, 2
        %v1017 = vadd.f32 %v1015, %v1016
        %v1018 = vrot.slane %v1017, 1
        %v1019 = vadd.f32 %v1017, %v1018
        %v1020 = vadd.f32 %v1010, %v1019
        %v1021 = vld [vmem:[#allocation2] sm:$0x1]
        %1023 = vset.pattern.permute.xlu0 0
        %1024 = vperm.xlu0 %1023, %v1021
        %v1025 = vpop.permute.xlu0 %1024
        %v1027 = vlaneseq
        %v1028 = vshrl.u32 %v1027, 7
        %v1029 = vsub.s32 0, %v1028
        %v1030 = vrot.slane %v1025, %v1029
        %v1031 = vadd.f32 %v1020, %v1030
        %1032 = vst [vmem:[%s417] sm:$0x1] %v1031
        %s1033 = sand.u32 %s243, 1
        %s1034 = scalar_lea.sflag [#allocation5], %s1033
        %s1035 = sand.u32 %s243, 1
        %s1036 = scalar_lea.vmem [#allocation9], %s1035
        // Predicated region
        $region69: #{tpu_custom_call.1} parent=55 // pred_check
          %p1037 = pneg %p253
        $region70: #{tpu_custom_call.1} parent=55 // pred_check_branch
          %1039 = sbr.rel (%p1037) target = $region72
        $region71: #{tpu_custom_call.1} parent=55 // pred_region
          %s1041 = ssub.s32 16, 16
          %1042 = vsyncadd %s1034, %s1041
          %s1043 = smul.addr %s31, 16
          %s1044 = scalar_lea.hbm %s9, %s1043
          %s1046 = sshll.u32 %s1036, 4
          %s1047 = int_to_ptr.vmem [resolvable:$true] %s1046
          %1049 = dma.vmem_to_hbm [thread:$0]  %s1047, 16, %s1044, %s1034
        $region72: #{tpu_custom_call.1} parent=55 // pred_fallthru
          _
      $region56: #{tpu_custom_call.1} parent=5 // pred_fallthru
        _
      %p1050 = scmp.le.s32.totalorder 2, %s26
      // Predicated region
      $region73: #{tpu_custom_call.1} parent=5 // pred_check
        %p1051 = pneg %p1050
      $region74: #{tpu_custom_call.1} parent=5 // pred_check_branch
        %1053 = sbr.rel (%p1051) target = $region76
      $region75: #{tpu_custom_call.1} parent=5 // pred_region
        %s1054 = ssub.s32 %s26, 2
        // Predicated region
        $region77: #{tpu_custom_call.1} parent=75 // pred_check
          %p1055 = pneg %p259
        $region78: #{tpu_custom_call.1} parent=75 // pred_check_branch
          %1057 = sbr.rel (%p1055) target = $region80
        $region79: #{tpu_custom_call.1} parent=75 // pred_region
          %s1058 = sand.u32 %s244, 1
          %s1059 = scalar_lea.sflag [#allocation5], %s1058
          %s1060 = sand.u32 %s244, 1
          %s1061 = scalar_lea.vmem [#allocation9], %s1060
          %1062 = dma.done %s1059, 16
        $region80: #{tpu_custom_call.1} parent=75 // pred_fallthru
          _
      $region76: #{tpu_custom_call.1} parent=5 // pred_fallthru
        _
    $region6: #{tpu_custom_call.1} parent=1 // loop_footer
      %s30 = sadd.s32 1, %s26
    $region7: #{tpu_custom_call.1} parent=1 // loop_footer_branch
      %25 = sbr.rel target = $region3
    $region8: #{tpu_custom_call.1} parent=1 // loop_exit
      _
    %1063 = vsyncpa [#allocation4], 1
    %s1064 = scalar_lea.sflag [#allocation4], 1
    %1065 = vsyncpa %s1064, 1
    %1066 = vsyncpa [#allocation7], 1
    %s1067 = scalar_lea.sflag [#allocation7], 1
    %1068 = vsyncpa %s1067, 1
    %1069 = vsyncpa [#allocation5], 1
    %s1070 = scalar_lea.sflag [#allocation5], 1
    %1071 = vsyncpa %s1070, 1

</llo_original>
